<compile_context>
chip_gen: v7x
topology: tpu7x:2x2x1
jax: 0.10.0
libtpu: 0.0.40
codegen_flags: <defaults>
</compile_context>

<pallas_src>
import functools

import jax
import jax.numpy as jnp
from jax import lax
from jax.experimental import pallas as pl
from jax.experimental.pallas import tpu as pltpu


# ---------------------------------------------------------------------------
# Kernel: one grid step == CT timesteps of the recurrence.
# ---------------------------------------------------------------------------
def lcne_chunk_kernel(
    x_ref,        # (CT, B, I)   stimulus chunk
    lc0_ref,      # (B, H)       initial LC state
    c0_ref,       # (B, H)       initial Cortex state
    w1_ref,       # (I+H, 2H)    [[W_x, W_x], [W_h, 0]]
    wlc_ref,      # (H, H)       W_LC
    w3_ref,       # (2H, H)      [[lam*W_LC], [W_C]]
    ps_ref,       # (12, H)      packed small params (biases / BN / W_P row)
    out_ref,      # (CT, B, 4H)  [LC_t | NE_t | C_t | pupil broadcast]
    xh_buf,       # scratch (B, I+H): persistent [X | prev_LC] assembly buffer
    c_state,      # scratch (B, H):  Cortex state carried across chunks
    *, unroll,
):
    f32 = jnp.float32
    eps = 1e-5
    CT, B, I = x_ref.shape
    H = wlc_ref.shape[0]

    # Seed the recurrent state on the first chunk only.
    @pl.when(pl.program_id(0) == 0)
    def _():
        xh_buf[:, I:I + H] = lc0_ref[...].astype(f32)
        c_state[...] = c0_ref[...].astype(f32)

    # Packed small parameters: hoist the (B, H) broadcasts once per chunk.
    ps = ps_ref[...]

    def row(i):
        return jnp.broadcast_to(ps[i:i + 1, :], (B, H))

    b_xh, b_x, b_lc, c_bias, w_p = row(0), row(1), row(2), row(3), row(4)
    bp3 = jnp.broadcast_to(ps[5:6, 0:1], (B, 1))        # 3 * b_P
    g1, be1 = row(6), row(7)
    g2, be2 = row(8), row(9)
    g3, be3 = row(10), row(11)

    def bn_train(v, gamma, beta):
        # Single-pass batch statistics (biased variance), eps = 1e-5.
        mu = jnp.mean(v, axis=0, keepdims=True)
        m2 = jnp.mean(v * v, axis=0, keepdims=True)
        var = m2 - mu * mu
        return (v - mu) * lax.rsqrt(var + eps) * gamma + beta

    def lrelu(v):
        return jnp.where(v > 0, v, 0.1 * v)

    def body(t, c_prev):
        # Assemble [X_t | prev_LC] in the persistent scratch (no concat).
        xh_buf[:, 0:I] = x_ref[t].astype(f32)
        xh = xh_buf[...]                                             # (B, I+H)

        # MXU push 1: LC_raw and x_input in one matmul.
        big = jnp.dot(xh, w1_ref[...], preferred_element_type=f32)   # (B, 2H)
        LC_raw = big[:, 0:H] + b_xh
        x_in = big[:, H:2 * H] + b_x
        LC_t = lrelu(bn_train(LC_raw, g1, be1))

        # MXU push 2: NE path.
        NE_raw = jnp.dot(LC_t, wlc_ref[...], preferred_element_type=f32) + b_lc
        NE_t = lrelu(bn_train(NE_raw, g2, be2))

        # MXU push 3: fused Cortex update (lambda folded into w3 / c_bias).
        nx = jnp.concatenate([NE_t, x_in], axis=-1)                  # (B, 2H)
        C_raw = c_prev + jnp.dot(nx, w3_ref[...],
                                 preferred_element_type=f32) + c_bias
        C_t = lrelu(bn_train(C_raw, g3, be3))

        # Pupil readout on VPU/XLU: (LC+NE+C) @ W_P + 3*b_P.
        s = LC_t + NE_t + C_t
        pupil = jnp.sum(s * w_p, axis=-1, keepdims=True) + bp3       # (B, 1)

        # One lane-dense (B, 4H) slab store per timestep (pupil broadcast into
        # the last H lanes instead of a zero pad).
        slab = jnp.concatenate(
            [LC_t, NE_t, C_t, jnp.broadcast_to(pupil, (B, H))], axis=-1)
        out_ref[t] = slab.astype(out_ref.dtype)

        # Carry LC in the assembly buffer; Cortex in the loop carry.
        xh_buf[:, I:I + H] = LC_t
        return C_t

    c_final = lax.fori_loop(0, CT, body, c_state[...], unroll=unroll)
    c_state[...] = c_final


# ---------------------------------------------------------------------------
# Wrappers
# ---------------------------------------------------------------------------
def lcne_forward_seq(X_seq, LC0, C0, params, lambda_cortex=0.1, chunk=None):
    """Run the recurrence over a whole sequence.

    X_seq: (T, B, input_dim); LC0, C0: (B, hidden_dim).
    Returns (LC_seq, NE_seq, C_seq, Pupil_seq) with leading time axis.
    """
    T, B, I = X_seq.shape
    H = params["W_h"].shape[0]
    SLAB = 4 * H
    f32 = jnp.float32
    lam = float(lambda_cortex)

    # Chunk of timesteps per grid step: whole sequence for small T, else 32.
    if chunk is None:
        chunk = T if T <= 32 else 32
    CT = min(int(chunk), T)
    num_chunks = pl.cdiv(T, CT)
    Tp = num_chunks * CT

    Xp = X_seq.astype(f32)
    if Tp != T:
        # Trailing zero-padding: padded steps never influence steps < T.
        Xp = jnp.concatenate([Xp, jnp.zeros((Tp - T, B, I), f32)], axis=0)

    # ---- one-time weight prep (fusions) -----------------------------------
    W_x = params["W_x"].astype(f32)
    W_h = params["W_h"].astype(f32)
    W_LC = params["W_LC"].astype(f32)
    W_C = params["W_C"].astype(f32)

    # Matmul-1 weight: [X | prev_LC] @ W1 = [LC_raw_pre_bias | x_input_pre_bias]
    W1 = jnp.concatenate(
        [jnp.concatenate([W_x, W_x], axis=1),
         jnp.concatenate([W_h, jnp.zeros((H, H), f32)], axis=1)], axis=0)
    # Cortex weight: [NE_t | x_input] @ W3 = lam*(NE@W_LC) + x_input@W_C
    W3 = jnp.concatenate([lam * W_LC, W_C], axis=0)

    b_x = params["b_x"].astype(f32).reshape(1, H)
    b_h = params["b_h"].astype(f32).reshape(1, H)
    b_LC = params["b_LC"].astype(f32).reshape(1, H)
    b_C = params["b_C"].astype(f32).reshape(1, H)
    b_P = params["b_P"].astype(f32).reshape(1, 1)
    w_p_row = params["W_P"].astype(f32).T.reshape(1, H)

    # Packed small-parameter stack: (12, H).
    pstack = jnp.concatenate([
        b_x + b_h,                               # 0: fused LC bias
        b_x,                                     # 1: x_input bias
        b_LC,                                    # 2: NE bias
        lam * b_LC + b_C,                        # 3: fused Cortex bias
        w_p_row,                                 # 4: W_P as a row
        jnp.broadcast_to(3.0 * b_P, (1, H)),     # 5: 3*b_P
        params["g1"].astype(f32).reshape(1, H),
        params["beta1"].astype(f32).reshape(1, H),
        params["g2"].astype(f32).reshape(1, H),
        params["beta2"].astype(f32).reshape(1, H),
        params["g3"].astype(f32).reshape(1, H),
        params["beta3"].astype(f32).reshape(1, H),
    ], axis=0)

    in_specs = [
        pl.BlockSpec((CT, B, I), lambda c: (c, 0, 0)),       # X: streamed chunk
        pl.BlockSpec((B, H), lambda c: (0, 0)),              # LC0: resident
        pl.BlockSpec((B, H), lambda c: (0, 0)),              # C0:  resident
        pl.BlockSpec((I + H, 2 * H), lambda c: (0, 0)),      # W1
        pl.BlockSpec((H, H), lambda c: (0, 0)),              # W_LC
        pl.BlockSpec((2 * H, H), lambda c: (0, 0)),          # W3
        pl.BlockSpec((12, H), lambda c: (0, 0)),             # packed params
    ]
    out_spec = pl.BlockSpec((CT, B, SLAB), lambda c: (c, 0, 0))

    unroll = True if CT <= 16 else 8

    # Advisory cost hint for the XLA scheduler.
    flops = int(2 * T * B * ((I + H) * 2 * H + H * H + 2 * H * H + H))
    bytes_accessed = int(4 * (Xp.size + LC0.size + C0.size + W1.size
                              + W_LC.size + W3.size + pstack.size
                              + Tp * B * SLAB))
    cost = pl.CostEstimate(flops=flops, transcendentals=int(3 * T * H),
                           bytes_accessed=bytes_accessed)

    out = pl.pallas_call(
        functools.partial(lcne_chunk_kernel, unroll=unroll),
        out_shape=jax.ShapeDtypeStruct((Tp, B, SLAB), f32),
        grid_spec=pltpu.PrefetchScalarGridSpec(
            num_scalar_prefetch=0,
            grid=(num_chunks,),
            in_specs=in_specs,
            out_specs=out_spec,
            scratch_shapes=[pltpu.VMEM((B, I + H), f32),   # [X | prev_LC]
                            pltpu.VMEM((B, H), f32)],      # Cortex state
        ),
        compiler_params=pltpu.CompilerParams(
            # State carries across chunks -> the time axis is sequential.
            dimension_semantics=("arbitrary",),
        ),
        cost_estimate=cost,
    )(Xp, LC0.astype(f32), C0.astype(f32), W1, W_LC, W3, pstack)

    out = out[:T]
    LC_seq = out[:, :, 0:H]
    NE_seq = out[:, :, H:2 * H]
    C_seq = out[:, :, 2 * H:3 * H]
    Pupil_seq = out[:, :, 3 * H:3 * H + 1]
    return LC_seq, NE_seq, C_seq, Pupil_seq


def lcne_forward(X, prev_LC, prev_Cortex, params, lambda_cortex=0.1):
    """Single-step forward (matches the PyTorch module signature)."""
    LC, NE, C, P = lcne_forward_seq(X[None], prev_LC, prev_Cortex, params,
                                    lambda_cortex)
    return LC[0], NE[0], C[0], P[0]


# ---------------------------------------------------------------------------
# Parameter init + pure-JAX references
# ---------------------------------------------------------------------------
def init_params(key, input_dim, hidden_dim):
    """Deterministic synthetic init (shapes match the PyTorch module)."""
    keys = jax.random.split(key, 10)
    s = 0.1
    return {
        "W_x":  s * jax.random.normal(keys[0], (input_dim, hidden_dim), jnp.float32),
        "b_x":  s * jax.random.normal(keys[1], (1, hidden_dim), jnp.float32),
        "W_h":  s * jax.random.normal(keys[2], (hidden_dim, hidden_dim), jnp.float32),
        "b_h":  s * jax.random.normal(keys[3], (1, hidden_dim), jnp.float32),
        "W_LC": s * jax.random.normal(keys[4], (hidden_dim, hidden_dim), jnp.float32),
        "b_LC": s * jax.random.normal(keys[5], (1, hidden_dim), jnp.float32),
        "W_C":  s * jax.random.normal(keys[6], (hidden_dim, hidden_dim), jnp.float32),
        "b_C":  s * jax.random.normal(keys[7], (1, hidden_dim), jnp.float32),
        "W_P":  s * jax.random.normal(keys[8], (hidden_dim, 1), jnp.float32),
        "b_P":  s * jax.random.normal(keys[9], (1, 1), jnp.float32),
        "g1": jnp.ones((1, hidden_dim), jnp.float32),
        "beta1": jnp.zeros((1, hidden_dim), jnp.float32),
        "g2": jnp.ones((1, hidden_dim), jnp.float32),
        "beta2": jnp.zeros((1, hidden_dim), jnp.float32),
        "g3": jnp.ones((1, hidden_dim), jnp.float32),
        "beta3": jnp.zeros((1, hidden_dim), jnp.float32),
    }


def lcne_step_ref(X, prev_LC, prev_Cortex, p, lambda_cortex=0.1):
    """Pure-JAX single-step reference (unfused weights, two-pass BN)."""
    eps = 1e-5

    def lin(x, w, b):
        return x @ w + b

    def bn(x, g, b):
        mu = jnp.mean(x, axis=0, keepdims=True)
        var = jnp.mean((x - mu) ** 2, axis=0, keepdims=True)
        return (x - mu) / jnp.sqrt(var + eps) * g + b

    def lrelu(x):
        return jnp.where(x > 0, x, 0.1 * x)

    x_input = lin(X, p["W_x"], p["b_x"])
    LC_raw = x_input + lin(prev_LC, p["W_h"], p["b_h"])
    LC_t = lrelu(bn(LC_raw, p["g1"], p["beta1"]))
    NE_raw = lin(LC_t, p["W_LC"], p["b_LC"])
    NE_t = lrelu(bn(NE_raw, p["g2"], p["beta2"]))
    C_raw = prev_Cortex + lambda_cortex * lin(NE_t, p["W_LC"], p["b_LC"]) \
        + lin(x_input, p["W_C"], p["b_C"])
    C_t = lrelu(bn(C_raw, p["g3"], p["beta3"]))
    Pupil_t = lin(LC_t, p["W_P"], p["b_P"]) + lin(C_t, p["W_P"], p["b_P"]) \
        + lin(NE_t, p["W_P"], p["b_P"])
    return LC_t, NE_t, C_t, Pupil_t


def lcne_seq_ref(X_seq, LC0, C0, p, lambda_cortex=0.1):
    LC, C = LC0, C0
    outs = []
    for t in range(X_seq.shape[0]):
        LC_t, NE_t, C_t, P_t = lcne_step_ref(X_seq[t], LC, C, p, lambda_cortex)
        outs.append((LC_t, NE_t, C_t, P_t))
        LC, C = LC_t, C_t
    return tuple(jnp.stack(xs) for xs in zip(*outs))


# ---------------------------------------------------------------------------
if __name__ == "__main__":
    T, B, INPUT_DIM, HIDDEN_DIM = 8, 8, 16, 32
    LAMBDA_CORTEX = 0.1

    key = jax.random.PRNGKey(0)
    k_params, k_x, k_lc, k_cx = jax.random.split(key, 4)

    params = init_params(k_params, INPUT_DIM, HIDDEN_DIM)
    X_seq = jax.random.normal(k_x, (T, B, INPUT_DIM), jnp.float32)
    LC0 = jax.random.normal(k_lc, (B, HIDDEN_DIM), jnp.float32)
    C0 = jax.random.normal(k_cx, (B, HIDDEN_DIM), jnp.float32)

    # Single-step forward (module semantics) -------------------------------
    outs1 = jax.block_until_ready(
        lcne_forward(X_seq[0], LC0, C0, params, LAMBDA_CORTEX))
    refs1 = lcne_step_ref(X_seq[0], LC0, C0, params, LAMBDA_CORTEX)
    for o, r in zip(outs1, refs1):
        assert o.shape == r.shape and o.dtype == r.dtype
        assert jnp.allclose(o, r, atol=1e-4, rtol=1e-4), "single-step mismatch"

    # Full-sequence fused recurrence ---------------------------------------
    outs_seq = jax.block_until_ready(
        lcne_forward_seq(X_seq, LC0, C0, params, LAMBDA_CORTEX))
    refs_seq = lcne_seq_ref(X_seq, LC0, C0, params, LAMBDA_CORTEX)
    for o, r in zip(outs_seq, refs_seq):
        assert o.shape == r.shape and o.dtype == r.dtype
        assert jnp.allclose(o, r, atol=1e-3, rtol=1e-3), "sequence mismatch"

    print("KERNEL_OK")
</pallas_src>

<mosaic_0001>
module attributes {stable_mosaic.version = 11 : i64} {
  func.func @lcne_chunk_kernel(%arg0: i32, %arg1: memref<1x8x16xf32, #tpu.memory_space<vmem>>, %arg2: memref<8x32xf32, #tpu.memory_space<vmem>>, %arg3: memref<8x32xf32, #tpu.memory_space<vmem>>, %arg4: memref<48x64xf32, #tpu.memory_space<vmem>>, %arg5: memref<32x32xf32, #tpu.memory_space<vmem>>, %arg6: memref<64x32xf32, #tpu.memory_space<vmem>>, %arg7: memref<12x32xf32, #tpu.memory_space<vmem>>, %arg8: memref<1x8x128xf32, #tpu.memory_space<vmem>>, %arg9: memref<8x48xf32, #tpu.memory_space<vmem>>, %arg10: memref<8x32xf32, #tpu.memory_space<vmem>>) attributes {dimension_semantics = [#tpu.dimension_semantics<arbitrary>], iteration_bounds = array<i64: 1>, scalar_prefetch = 0 : i64, scratch_operands = 2 : i64, tpu.core_type = #tpu.core_type<tc>, window_params = [{transform_indices = @transform_0, window_bounds = array<i64: 1, 8, 16>}, {pipeline_mode = #tpu.pipeline_mode<synchronous>, transform_indices = @transform_1, window_bounds = array<i64: 8, 32>}, {pipeline_mode = #tpu.pipeline_mode<synchronous>, transform_indices = @transform_2, window_bounds = array<i64: 8, 32>}, {pipeline_mode = #tpu.pipeline_mode<synchronous>, transform_indices = @transform_3, window_bounds = array<i64: 48, 64>}, {pipeline_mode = #tpu.pipeline_mode<synchronous>, transform_indices = @transform_4, window_bounds = array<i64: 32, 32>}, {pipeline_mode = #tpu.pipeline_mode<synchronous>, transform_indices = @transform_5, window_bounds = array<i64: 64, 32>}, {pipeline_mode = #tpu.pipeline_mode<synchronous>, transform_indices = @transform_6, window_bounds = array<i64: 12, 32>}, {transform_indices = @transform_7, window_bounds = array<i64: 1, 8, 128>}]} {
    %c0_i32 = arith.constant 0 : i32
    %0 = arith.cmpi eq, %arg0, %c0_i32 : i32
    %1 = arith.extui %0 : i1 to i32
    %c0_i32_0 = arith.constant 0 : i32
    %2 = arith.cmpi ne, %1, %c0_i32_0 : i32
    scf.if %2 {
      %c0_46 = arith.constant 0 : index
      %c0_47 = arith.constant 0 : index
      %150 = vector.load %arg2[%c0_46, %c0_47] : memref<8x32xf32, #tpu.memory_space<vmem>>, vector<8x32xf32>
      %c0_48 = arith.constant 0 : index
      %c16_49 = arith.constant 16 : index
      %151 = vector.load %arg9[%c0_48, %c16_49] : memref<8x48xf32, #tpu.memory_space<vmem>>, vector<8x32xf32>
      tpu.vector_store %arg9[%c0_48, %c16_49], %150 {strides = array<i32>} : memref<8x48xf32, #tpu.memory_space<vmem>>, vector<8x32xf32>,
      %c0_50 = arith.constant 0 : index
      %c0_51 = arith.constant 0 : index
      %152 = vector.load %arg3[%c0_50, %c0_51] : memref<8x32xf32, #tpu.memory_space<vmem>>, vector<8x32xf32>
      %c0_52 = arith.constant 0 : index
      %c0_53 = arith.constant 0 : index
      %153 = vector.load %arg10[%c0_52, %c0_53] : memref<8x32xf32, #tpu.memory_space<vmem>>, vector<8x32xf32>
      tpu.vector_store %arg10[%c0_52, %c0_53], %152 {strides = array<i32>} : memref<8x32xf32, #tpu.memory_space<vmem>>, vector<8x32xf32>,
    } else {
    }
    %c0 = arith.constant 0 : index
    %c0_1 = arith.constant 0 : index
    %3 = vector.load %arg7[%c0, %c0_1] : memref<12x32xf32, #tpu.memory_space<vmem>>, vector<12x32xf32>
    %4 = vector.extract_strided_slice %3 {offsets = [0, 0], sizes = [1, 32], strides = [1, 1]} : vector<12x32xf32> to vector<1x32xf32>
    %5 = vector.shape_cast %4 : vector<1x32xf32> to vector<1x32xf32>
    %6 = vector.broadcast %5 : vector<1x32xf32> to vector<8x32xf32>
    %7 = vector.extract_strided_slice %3 {offsets = [1, 0], sizes = [1, 32], strides = [1, 1]} : vector<12x32xf32> to vector<1x32xf32>
    %8 = vector.shape_cast %7 : vector<1x32xf32> to vector<1x32xf32>
    %9 = vector.broadcast %8 : vector<1x32xf32> to vector<8x32xf32>
    %10 = vector.extract_strided_slice %3 {offsets = [2, 0], sizes = [1, 32], strides = [1, 1]} : vector<12x32xf32> to vector<1x32xf32>
    %11 = vector.shape_cast %10 : vector<1x32xf32> to vector<1x32xf32>
    %12 = vector.broadcast %11 : vector<1x32xf32> to vector<8x32xf32>
    %13 = vector.extract_strided_slice %3 {offsets = [3, 0], sizes = [1, 32], strides = [1, 1]} : vector<12x32xf32> to vector<1x32xf32>
    %14 = vector.shape_cast %13 : vector<1x32xf32> to vector<1x32xf32>
    %15 = vector.broadcast %14 : vector<1x32xf32> to vector<8x32xf32>
    %16 = vector.extract_strided_slice %3 {offsets = [4, 0], sizes = [1, 32], strides = [1, 1]} : vector<12x32xf32> to vector<1x32xf32>
    %17 = vector.shape_cast %16 : vector<1x32xf32> to vector<1x32xf32>
    %18 = vector.broadcast %17 : vector<1x32xf32> to vector<8x32xf32>
    %19 = vector.extract_strided_slice %3 {offsets = [5, 0], sizes = [1, 1], strides = [1, 1]} : vector<12x32xf32> to vector<1x1xf32>
    %20 = vector.shape_cast %19 : vector<1x1xf32> to vector<1x1xf32>
    %21 = vector.broadcast %20 : vector<1x1xf32> to vector<8x1xf32>
    %22 = vector.extract_strided_slice %3 {offsets = [6, 0], sizes = [1, 32], strides = [1, 1]} : vector<12x32xf32> to vector<1x32xf32>
    %23 = vector.shape_cast %22 : vector<1x32xf32> to vector<1x32xf32>
    %24 = vector.broadcast %23 : vector<1x32xf32> to vector<8x32xf32>
    %25 = vector.extract_strided_slice %3 {offsets = [7, 0], sizes = [1, 32], strides = [1, 1]} : vector<12x32xf32> to vector<1x32xf32>
    %26 = vector.shape_cast %25 : vector<1x32xf32> to vector<1x32xf32>
    %27 = vector.broadcast %26 : vector<1x32xf32> to vector<8x32xf32>
    %28 = vector.extract_strided_slice %3 {offsets = [8, 0], sizes = [1, 32], strides = [1, 1]} : vector<12x32xf32> to vector<1x32xf32>
    %29 = vector.shape_cast %28 : vector<1x32xf32> to vector<1x32xf32>
    %30 = vector.broadcast %29 : vector<1x32xf32> to vector<8x32xf32>
    %31 = vector.extract_strided_slice %3 {offsets = [9, 0], sizes = [1, 32], strides = [1, 1]} : vector<12x32xf32> to vector<1x32xf32>
    %32 = vector.shape_cast %31 : vector<1x32xf32> to vector<1x32xf32>
    %33 = vector.broadcast %32 : vector<1x32xf32> to vector<8x32xf32>
    %34 = vector.extract_strided_slice %3 {offsets = [10, 0], sizes = [1, 32], strides = [1, 1]} : vector<12x32xf32> to vector<1x32xf32>
    %35 = vector.shape_cast %34 : vector<1x32xf32> to vector<1x32xf32>
    %36 = vector.broadcast %35 : vector<1x32xf32> to vector<8x32xf32>
    %37 = vector.extract_strided_slice %3 {offsets = [11, 0], sizes = [1, 32], strides = [1, 1]} : vector<12x32xf32> to vector<1x32xf32>
    %38 = vector.shape_cast %37 : vector<1x32xf32> to vector<1x32xf32>
    %39 = vector.broadcast %38 : vector<1x32xf32> to vector<8x32xf32>
    %c0_2 = arith.constant 0 : index
    %c0_3 = arith.constant 0 : index
    %40 = vector.load %arg10[%c0_2, %c0_3] : memref<8x32xf32, #tpu.memory_space<vmem>>, vector<8x32xf32>
    %c0_i32_4 = arith.constant 0 : i32
    %41 = arith.index_cast %c0_i32_4 : i32 to index
    %c0_5 = arith.constant 0 : index
    %c0_6 = arith.constant 0 : index
    %42 = vector.load %arg1[%41, %c0_5, %c0_6] : memref<1x8x16xf32, #tpu.memory_space<vmem>>, vector<1x8x16xf32>
    %43 = vector.shape_cast %42 : vector<1x8x16xf32> to vector<8x16xf32>
    %c0_7 = arith.constant 0 : index
    %c0_8 = arith.constant 0 : index
    %44 = vector.load %arg9[%c0_7, %c0_8] : memref<8x48xf32, #tpu.memory_space<vmem>>, vector<8x16xf32>
    tpu.vector_store %arg9[%c0_7, %c0_8], %43 {strides = array<i32>} : memref<8x48xf32, #tpu.memory_space<vmem>>, vector<8x16xf32>,
    %c0_9 = arith.constant 0 : index
    %c0_10 = arith.constant 0 : index
    %45 = vector.load %arg9[%c0_9, %c0_10] : memref<8x48xf32, #tpu.memory_space<vmem>>, vector<8x48xf32>
    %c0_11 = arith.constant 0 : index
    %c0_12 = arith.constant 0 : index
    %46 = vector.load %arg4[%c0_11, %c0_12] : memref<48x64xf32, #tpu.memory_space<vmem>>, vector<48x64xf32>
    %cst = arith.constant dense<0.000000e+00> : vector<8x64xf32>
    %47 = tpu.matmul %45, %46, %cst {dimension_numbers = #tpu.dot_dimension_numbers<[1], [0], [0], [1], [0, 0, 1, 1], [], []>} : vector<8x48xf32>, vector<48x64xf32>, vector<8x64xf32> -> vector<8x64xf32>
    %48 = vector.extract_strided_slice %47 {offsets = [0, 0], sizes = [8, 32], strides = [1, 1]} : vector<8x64xf32> to vector<8x32xf32>
    %49 = arith.addf %48, %6 : vector<8x32xf32>
    %50 = vector.extract_strided_slice %47 {offsets = [0, 32], sizes = [8, 32], strides = [1, 1]} : vector<8x64xf32> to vector<8x32xf32>
    %51 = arith.addf %50, %9 : vector<8x32xf32>
    %cst_13 = arith.constant dense<0.000000e+00> : vector<32xf32>
    %52 = vector.multi_reduction <add>, %49, %cst_13 [0] : vector<8x32xf32> to vector<32xf32>
    %53 = vector.shape_cast %52 : vector<32xf32> to vector<1x32xf32>
    %cst_14 = arith.constant 8.000000e+00 : f32
    %54 = vector.broadcast %cst_14 : f32 to vector<1x32xf32>
    %55 = arith.divf %53, %54 : vector<1x32xf32>
    %56 = arith.mulf %49, %49 : vector<8x32xf32>
    %cst_15 = arith.constant dense<0.000000e+00> : vector<32xf32>
    %57 = vector.multi_reduction <add>, %56, %cst_15 [0] : vector<8x32xf32> to vector<32xf32>
    %58 = vector.shape_cast %57 : vector<32xf32> to vector<1x32xf32>
    %cst_16 = arith.constant 8.000000e+00 : f32
    %59 = vector.broadcast %cst_16 : f32 to vector<1x32xf32>
    %60 = arith.divf %58, %59 : vector<1x32xf32>
    %61 = arith.mulf %55, %55 : vector<1x32xf32>
    %62 = arith.subf %60, %61 : vector<1x32xf32>
    %63 = vector.broadcast %55 : vector<1x32xf32> to vector<8x32xf32>
    %64 = arith.subf %49, %63 : vector<8x32xf32>
    %cst_17 = arith.constant 9.99999974E-6 : f32
    %65 = vector.broadcast %cst_17 : f32 to vector<1x32xf32>
    %66 = arith.addf %62, %65 : vector<1x32xf32>
    %67 = math.rsqrt %66 : vector<1x32xf32>
    %68 = vector.broadcast %67 : vector<1x32xf32> to vector<8x32xf32>
    %69 = arith.mulf %64, %68 : vector<8x32xf32>
    %70 = arith.mulf %69, %24 : vector<8x32xf32>
    %71 = arith.addf %70, %27 : vector<8x32xf32>
    %cst_18 = arith.constant 0.000000e+00 : f32
    %72 = vector.broadcast %cst_18 : f32 to vector<8x32xf32>
    %73 = arith.cmpf ogt, %71, %72 : vector<8x32xf32>
    %cst_19 = arith.constant 1.000000e-01 : f32
    %74 = vector.broadcast %cst_19 : f32 to vector<8x32xf32>
    %75 = arith.mulf %74, %71 : vector<8x32xf32>
    %76 = arith.select %73, %71, %75 : vector<8x32xi1>, vector<8x32xf32>
    %c0_20 = arith.constant 0 : index
    %c0_21 = arith.constant 0 : index
    %77 = vector.load %arg5[%c0_20, %c0_21] : memref<32x32xf32, #tpu.memory_space<vmem>>, vector<32x32xf32>
    %cst_22 = arith.constant dense<0.000000e+00> : vector<8x32xf32>
    %78 = tpu.matmul %76, %77, %cst_22 {dimension_numbers = #tpu.dot_dimension_numbers<[1], [0], [0], [1], [0, 0, 1, 1], [], []>} : vector<8x32xf32>, vector<32x32xf32>, vector<8x32xf32> -> vector<8x32xf32>
    %79 = arith.addf %78, %12 : vector<8x32xf32>
    %cst_23 = arith.constant dense<0.000000e+00> : vector<32xf32>
    %80 = vector.multi_reduction <add>, %79, %cst_23 [0] : vector<8x32xf32> to vector<32xf32>
    %81 = vector.shape_cast %80 : vector<32xf32> to vector<1x32xf32>
    %cst_24 = arith.constant 8.000000e+00 : f32
    %82 = vector.broadcast %cst_24 : f32 to vector<1x32xf32>
    %83 = arith.divf %81, %82 : vector<1x32xf32>
    %84 = arith.mulf %79, %79 : vector<8x32xf32>
    %cst_25 = arith.constant dense<0.000000e+00> : vector<32xf32>
    %85 = vector.multi_reduction <add>, %84, %cst_25 [0] : vector<8x32xf32> to vector<32xf32>
    %86 = vector.shape_cast %85 : vector<32xf32> to vector<1x32xf32>
    %cst_26 = arith.constant 8.000000e+00 : f32
    %87 = vector.broadcast %cst_26 : f32 to vector<1x32xf32>
    %88 = arith.divf %86, %87 : vector<1x32xf32>
    %89 = arith.mulf %83, %83 : vector<1x32xf32>
    %90 = arith.subf %88, %89 : vector<1x32xf32>
    %91 = vector.broadcast %83 : vector<1x32xf32> to vector<8x32xf32>
    %92 = arith.subf %79, %91 : vector<8x32xf32>
    %cst_27 = arith.constant 9.99999974E-6 : f32
    %93 = vector.broadcast %cst_27 : f32 to vector<1x32xf32>
    %94 = arith.addf %90, %93 : vector<1x32xf32>
    %95 = math.rsqrt %94 : vector<1x32xf32>
    %96 = vector.broadcast %95 : vector<1x32xf32> to vector<8x32xf32>
    %97 = arith.mulf %92, %96 : vector<8x32xf32>
    %98 = arith.mulf %97, %30 : vector<8x32xf32>
    %99 = arith.addf %98, %33 : vector<8x32xf32>
    %cst_28 = arith.constant 0.000000e+00 : f32
    %100 = vector.broadcast %cst_28 : f32 to vector<8x32xf32>
    %101 = arith.cmpf ogt, %99, %100 : vector<8x32xf32>
    %cst_29 = arith.constant 1.000000e-01 : f32
    %102 = vector.broadcast %cst_29 : f32 to vector<8x32xf32>
    %103 = arith.mulf %102, %99 : vector<8x32xf32>
    %104 = arith.select %101, %99, %103 : vector<8x32xi1>, vector<8x32xf32>
    %105 = tpu.concatenate %104, %51 in 1 : vector<8x32xf32>, vector<8x32xf32> -> vector<8x64xf32>
    %c0_30 = arith.constant 0 : index
    %c0_31 = arith.constant 0 : index
    %106 = vector.load %arg6[%c0_30, %c0_31] : memref<64x32xf32, #tpu.memory_space<vmem>>, vector<64x32xf32>
    %cst_32 = arith.constant dense<0.000000e+00> : vector<8x32xf32>
    %107 = tpu.matmul %105, %106, %cst_32 {dimension_numbers = #tpu.dot_dimension_numbers<[1], [0], [0], [1], [0, 0, 1, 1], [], []>} : vector<8x64xf32>, vector<64x32xf32>, vector<8x32xf32> -> vector<8x32xf32>
    %108 = arith.addf %40, %107 : vector<8x32xf32>
    %109 = arith.addf %108, %15 : vector<8x32xf32>
    %cst_33 = arith.constant dense<0.000000e+00> : vector<32xf32>
    %110 = vector.multi_reduction <add>, %109, %cst_33 [0] : vector<8x32xf32> to vector<32xf32>
    %111 = vector.shape_cast %110 : vector<32xf32> to vector<1x32xf32>
    %cst_34 = arith.constant 8.000000e+00 : f32
    %112 = vector.broadcast %cst_34 : f32 to vector<1x32xf32>
    %113 = arith.divf %111, %112 : vector<1x32xf32>
    %114 = arith.mulf %109, %109 : vector<8x32xf32>
    %cst_35 = arith.constant dense<0.000000e+00> : vector<32xf32>
    %115 = vector.multi_reduction <add>, %114, %cst_35 [0] : vector<8x32xf32> to vector<32xf32>
    %116 = vector.shape_cast %115 : vector<32xf32> to vector<1x32xf32>
    %cst_36 = arith.constant 8.000000e+00 : f32
    %117 = vector.broadcast %cst_36 : f32 to vector<1x32xf32>
    %118 = arith.divf %116, %117 : vector<1x32xf32>
    %119 = arith.mulf %113, %113 : vector<1x32xf32>
    %120 = arith.subf %118, %119 : vector<1x32xf32>
    %121 = vector.broadcast %113 : vector<1x32xf32> to vector<8x32xf32>
    %122 = arith.subf %109, %121 : vector<8x32xf32>
    %cst_37 = arith.constant 9.99999974E-6 : f32
    %123 = vector.broadcast %cst_37 : f32 to vector<1x32xf32>
    %124 = arith.addf %120, %123 : vector<1x32xf32>
    %125 = math.rsqrt %124 : vector<1x32xf32>
    %126 = vector.broadcast %125 : vector<1x32xf32> to vector<8x32xf32>
    %127 = arith.mulf %122, %126 : vector<8x32xf32>
    %128 = arith.mulf %127, %36 : vector<8x32xf32>
    %129 = arith.addf %128, %39 : vector<8x32xf32>
    %cst_38 = arith.constant 0.000000e+00 : f32
    %130 = vector.broadcast %cst_38 : f32 to vector<8x32xf32>
    %131 = arith.cmpf ogt, %129, %130 : vector<8x32xf32>
    %cst_39 = arith.constant 1.000000e-01 : f32
    %132 = vector.broadcast %cst_39 : f32 to vector<8x32xf32>
    %133 = arith.mulf %132, %129 : vector<8x32xf32>
    %134 = arith.select %131, %129, %133 : vector<8x32xi1>, vector<8x32xf32>
    %135 = arith.addf %76, %104 : vector<8x32xf32>
    %136 = arith.addf %135, %134 : vector<8x32xf32>
    %137 = arith.mulf %136, %18 : vector<8x32xf32>
    %cst_40 = arith.constant dense<0.000000e+00> : vector<8xf32>
    %138 = vector.multi_reduction <add>, %137, %cst_40 [1] : vector<8x32xf32> to vector<8xf32>
    %139 = vector.shape_cast %138 : vector<8xf32> to vector<8x1xf32>
    %140 = arith.addf %139, %21 : vector<8x1xf32>
    %141 = vector.shape_cast %140 : vector<8x1xf32> to vector<8x1xf32>
    %142 = vector.broadcast %141 : vector<8x1xf32> to vector<8x32xf32>
    %143 = tpu.concatenate %76, %104, %134, %142 in 1 : vector<8x32xf32>, vector<8x32xf32>, vector<8x32xf32>, vector<8x32xf32> -> vector<8x128xf32>
    %144 = arith.index_cast %c0_i32_4 : i32 to index
    %c0_41 = arith.constant 0 : index
    %c0_42 = arith.constant 0 : index
    %145 = vector.load %arg8[%144, %c0_41, %c0_42] : memref<1x8x128xf32, #tpu.memory_space<vmem>>, vector<1x8x128xf32>
    %146 = vector.shape_cast %145 : vector<1x8x128xf32> to vector<8x128xf32>
    %147 = vector.shape_cast %143 : vector<8x128xf32> to vector<1x8x128xf32>
    tpu.vector_store %arg8[%144, %c0_41, %c0_42], %147 {strides = array<i32>} : memref<1x8x128xf32, #tpu.memory_space<vmem>>, vector<1x8x128xf32>,
    %c0_43 = arith.constant 0 : index
    %c16 = arith.constant 16 : index
    %148 = vector.load %arg9[%c0_43, %c16] : memref<8x48xf32, #tpu.memory_space<vmem>>, vector<8x32xf32>
    tpu.vector_store %arg9[%c0_43, %c16], %76 {strides = array<i32>} : memref<8x48xf32, #tpu.memory_space<vmem>>, vector<8x32xf32>,
    %c1_i32 = arith.constant 1 : i32
    %c0_44 = arith.constant 0 : index
    %c0_45 = arith.constant 0 : index
    %149 = vector.load %arg10[%c0_44, %c0_45] : memref<8x32xf32, #tpu.memory_space<vmem>>, vector<8x32xf32>
    tpu.vector_store %arg10[%c0_44, %c0_45], %134 {strides = array<i32>} : memref<8x32xf32, #tpu.memory_space<vmem>>, vector<8x32xf32>,
    return
  }
  func.func @transform_0(%arg0: i32) -> (i32, i32, i32) {
    %c0_i32 = arith.constant 0 : i32
    %c0_i32_0 = arith.constant 0 : i32
    %c0_i32_1 = arith.constant 0 : i32
    return %arg0, %c0_i32, %c0_i32_0 : i32, i32, i32
  }
  func.func @transform_1(%arg0: i32) -> (i32, i32) {
    %c0_i32 = arith.constant 0 : i32
    %c0_i32_0 = arith.constant 0 : i32
    %c0_i32_1 = arith.constant 0 : i32
    return %c0_i32, %c0_i32_0 : i32, i32
  }
  func.func @transform_2(%arg0: i32) -> (i32, i32) {
    %c0_i32 = arith.constant 0 : i32
    %c0_i32_0 = arith.constant 0 : i32
    %c0_i32_1 = arith.constant 0 : i32
    return %c0_i32, %c0_i32_0 : i32, i32
  }
  func.func @transform_3(%arg0: i32) -> (i32, i32) {
    %c0_i32 = arith.constant 0 : i32
    %c0_i32_0 = arith.constant 0 : i32
    %c0_i32_1 = arith.constant 0 : i32
    return %c0_i32, %c0_i32_0 : i32, i32
  }
  func.func @transform_4(%arg0: i32) -> (i32, i32) {
    %c0_i32 = arith.constant 0 : i32
    %c0_i32_0 = arith.constant 0 : i32
    %c0_i32_1 = arith.constant 0 : i32
    return %c0_i32, %c0_i32_0 : i32, i32
  }
  func.func @transform_5(%arg0: i32) -> (i32, i32) {
    %c0_i32 = arith.constant 0 : i32
    %c0_i32_0 = arith.constant 0 : i32
    %c0_i32_1 = arith.constant 0 : i32
    return %c0_i32, %c0_i32_0 : i32, i32
  }
  func.func @transform_6(%arg0: i32) -> (i32, i32) {
    %c0_i32 = arith.constant 0 : i32
    %c0_i32_0 = arith.constant 0 : i32
    %c0_i32_1 = arith.constant 0 : i32
    return %c0_i32, %c0_i32_0 : i32, i32
  }
  func.func @transform_7(%arg0: i32) -> (i32, i32, i32) {
    %c0_i32 = arith.constant 0 : i32
    %c0_i32_0 = arith.constant 0 : i32
    %c0_i32_1 = arith.constant 0 : i32
    return %arg0, %c0_i32, %c0_i32_0 : i32, i32, i32
  }
}

</mosaic_0001>

<llo_original>
// kernel: tpu_custom_call.1
$region0: #{tpu_custom_call.1}
  #allocation0 [shape = 'u32[]', space=smem, size = 0x4, offset = 0x4, fixed_abs, tag = 'smem constant byte address 0x4 - core index']
  #allocation1 [shape = 'u32[144,128]{1,0:T(1,128)}', space=vmem, size = 0x12000, scoped, tag = 'internal scratch']
  #allocation2 [shape = 'f32[8,48]{1,0:T(8,128)}', space=vmem, size = 0x1000, scoped, tag = 'scratch operand']
  #allocation3 [shape = 'f32[8,32]{1,0:T(8,128)}', space=vmem, size = 0x1000, scoped, tag = 'scratch operand']
  %s0 = inlined_call_operand.hbm [shape: f32[1,8,16], index: 0, kind: input, shape index: {}]
  %s1 = inlined_call_operand.hbm [shape: f32[8,32], index: 1, kind: input, shape index: {}]
  %s2 = inlined_call_operand.hbm [shape: f32[8,32], index: 2, kind: input, shape index: {}]
  %s3 = inlined_call_operand.vmem [shape: f32[48,64], index: 3, kind: input, shape index: {}]
  %s4 = inlined_call_operand.vmem [shape: f32[32,32], index: 4, kind: input, shape index: {}]
  %s5 = inlined_call_operand.vmem [shape: f32[64,32], index: 5, kind: input, shape index: {}]
  %s6 = inlined_call_operand.vmem [shape: f32[12,32], index: 6, kind: input, shape index: {}]
  %s7 = inlined_call_operand.hbm [shape: f32[1,8,128], index: 7, kind: output, shape index: {}]
  %s8 = sld [smem:[#allocation0]]
  $region54: #{tpu_custom_call.1} parent=0
    _
  %s10 = ssub.s32 1, %s8
  %s11 = scalar_select 0, %s10, %s8
  $region1: #{tpu_custom_call.1} parent=0
    #allocation4 [shape = 'u8[4096]{0}', space=vmem, size = 0x1000, scoped, tag = 'input window, operand 0, single buffered']
    #allocation5 [shape = 's32[1]{0}', space=sflag, size = 0x4, scoped, tag = 'scoped memory for tpu_custom_call.1']
    #allocation6 [shape = 's32[1]{0}', space=sflag, size = 0x4, scoped, tag = 'scoped memory for tpu_custom_call.1']
    #allocation7 [shape = 'u8[4096]{0}', space=vmem, size = 0x1000, scoped, tag = 'input window, operand 1, single buffered']
    #allocation8 [shape = 's32[1]{0}', space=sflag, size = 0x4, scoped, tag = 'scoped memory for tpu_custom_call.1']
    #allocation9 [shape = 'u8[4096]{0}', space=vmem, size = 0x1000, scoped, tag = 'input window, operand 2, single buffered']
    #allocation10 [shape = 'u8[4096]{0}', space=vmem, size = 0x1000, scoped, tag = 'output window, operand 0, single buffered']
    %12 = vsyncpa [#allocation5], 0
    %13 = vsyncpa [#allocation8], 0
    %14 = vsyncpa [#allocation6], 0
    // Predicated region
    $region2: #{tpu_custom_call.1} parent=1 // pred_check
      _
    $region3: #{tpu_custom_call.1} parent=1 // pred_check_branch
      %16 = sbr.rel (0) target = $region5
    $region4: #{tpu_custom_call.1} parent=1 // pred_region
      %s18 = ssub.s32 128, 128
      %19 = vsyncadd [#allocation5], %s18
      %s21 = sshll.u32 [#allocation4], 4
      %s22 = int_to_ptr.vmem [resolvable:$true] %s21
      %24 = dma.hbm_to_vmem [thread:$0]  %s0, 128, %s22, [#allocation5]
    $region5: #{tpu_custom_call.1} parent=1 // pred_fallthru
      _
    // Predicated region
    $region6: #{tpu_custom_call.1} parent=1 // pred_check
      _
    $region7: #{tpu_custom_call.1} parent=1 // pred_check_branch
      %26 = sbr.rel (0) target = $region9
    $region8: #{tpu_custom_call.1} parent=1 // pred_region
      %s28 = ssub.s32 128, 128
      %29 = vsyncadd [#allocation8], %s28
      %s31 = sshll.u32 [#allocation7], 4
      %s32 = int_to_ptr.vmem [resolvable:$true] %s31
      %34 = dma.hbm_to_vmem [thread:$0]  %s1, 128, %s32, [#allocation8]
    $region9: #{tpu_custom_call.1} parent=1 // pred_fallthru
      _
    // Predicated region
    $region10: #{tpu_custom_call.1} parent=1 // pred_check
      _
    $region11: #{tpu_custom_call.1} parent=1 // pred_check_branch
      %36 = sbr.rel (0) target = $region13
    $region12: #{tpu_custom_call.1} parent=1 // pred_region
      %s38 = ssub.s32 128, 128
      %39 = vsyncadd [#allocation8], %s38
      %s41 = sshll.u32 [#allocation9], 4
      %s42 = int_to_ptr.vmem [resolvable:$true] %s41
      %44 = dma.hbm_to_vmem [thread:$0]  %s2, 128, %s42, [#allocation8]
    $region13: #{tpu_custom_call.1} parent=1 // pred_fallthru
      _
    // Predicated region
    $region14: #{tpu_custom_call.1} parent=1 // pred_check
      _
    $region15: #{tpu_custom_call.1} parent=1 // pred_check_branch
      %46 = sbr.rel (0) target = $region17
    $region16: #{tpu_custom_call.1} parent=1 // pred_region
      _
    $region17: #{tpu_custom_call.1} parent=1 // pred_fallthru
      _
    // Predicated region
    $region18: #{tpu_custom_call.1} parent=1 // pred_check
      _
    $region19: #{tpu_custom_call.1} parent=1 // pred_check_branch
      %48 = sbr.rel (0) target = $region21
    $region20: #{tpu_custom_call.1} parent=1 // pred_region
      _
    $region21: #{tpu_custom_call.1} parent=1 // pred_fallthru
      _
    // Predicated region
    $region22: #{tpu_custom_call.1} parent=1 // pred_check
      _
    $region23: #{tpu_custom_call.1} parent=1 // pred_check_branch
      %50 = sbr.rel (0) target = $region25
    $region24: #{tpu_custom_call.1} parent=1 // pred_region
      _
    $region25: #{tpu_custom_call.1} parent=1 // pred_fallthru
      _
    // Predicated region
    $region26: #{tpu_custom_call.1} parent=1 // pred_check
      _
    $region27: #{tpu_custom_call.1} parent=1 // pred_check_branch
      %52 = sbr.rel (0) target = $region29
    $region28: #{tpu_custom_call.1} parent=1 // pred_region
      _
    $region29: #{tpu_custom_call.1} parent=1 // pred_fallthru
      _
    // Predicated region
    $region30: #{tpu_custom_call.1} parent=1 // pred_check
      _
    $region31: #{tpu_custom_call.1} parent=1 // pred_check_branch
      %54 = sbr.rel (0) target = $region33
    $region32: #{tpu_custom_call.1} parent=1 // pred_region
      %55 = dma.done [#allocation5], 128
    $region33: #{tpu_custom_call.1} parent=1 // pred_fallthru
      _
    // Predicated region
    $region34: #{tpu_custom_call.1} parent=1 // pred_check
      _
    $region35: #{tpu_custom_call.1} parent=1 // pred_check_branch
      %57 = sbr.rel (0) target = $region37
    $region36: #{tpu_custom_call.1} parent=1 // pred_region
      %58 = dma.done [#allocation8], 128
    $region37: #{tpu_custom_call.1} parent=1 // pred_fallthru
      _
    // Predicated region
    $region38: #{tpu_custom_call.1} parent=1 // pred_check
      _
    $region39: #{tpu_custom_call.1} parent=1 // pred_check_branch
      %60 = sbr.rel (0) target = $region41
    $region40: #{tpu_custom_call.1} parent=1 // pred_region
      %61 = dma.done [#allocation8], 128
    $region41: #{tpu_custom_call.1} parent=1 // pred_fallthru
      _
    %p62 = scmp.eq.s32.totalorder 0, 0
    // Predicated region
    $region42: #{tpu_custom_call.1} parent=1 // pred_check
      %p63 = pneg %p62
    $region43: #{tpu_custom_call.1} parent=1 // pred_check_branch
      %65 = sbr.rel (%p63) target = $region45
    $region44: #{tpu_custom_call.1} parent=1 // pred_region
      %v66 = vld [vmem:[#allocation7] sm:$0xff]
      %68 = vrot.lane.b32.xlu0 %v66, 16
      %v69 = vpop.permute.xlu0 %68
      %vm71 = vcmask 392320
      %72 = vst.msk [vmem:[#allocation2] sm:$0xff] %vm71, %v69
      %v73 = vld [vmem:[#allocation9] sm:$0xff]
      %vm74 = vcmask 261120
      %75 = vst.msk [vmem:[#allocation3] sm:$0xff] %vm74, %v73
    $region45: #{tpu_custom_call.1} parent=1 // pred_fallthru
      _
    %v76 = vld [vmem:[%s6] sm:$0xff]
    %v77 = vld [vmem:[%s6 + $0x8] sm:$0xf]
    %v78 = vlaneseq
    %v79 = vshrl.u32 %v78, 7
    %v80 = vsub.s32 0, %v79
    %v81 = vrot.slane %v76, %v80
    %v82 = vlaneseq
    %v83 = vshrl.u32 %v82, 7
    %v84 = vsub.s32 1, %v83
    %v85 = vrot.slane %v76, %v84
    %v86 = vlaneseq
    %v87 = vshrl.u32 %v86, 7
    %v88 = vsub.s32 2, %v87
    %v89 = vrot.slane %v76, %v88
    %v90 = vlaneseq
    %v91 = vshrl.u32 %v90, 7
    %v92 = vsub.s32 3, %v91
    %v93 = vrot.slane %v76, %v92
    %v94 = vlaneseq
    %v95 = vshrl.u32 %v94, 7
    %v96 = vsub.s32 4, %v95
    %v97 = vrot.slane %v76, %v96
    %v98 = vlaneseq
    %v99 = vshrl.u32 %v98, 7
    %v100 = vsub.s32 5, %v99
    %v101 = vrot.slane %v76, %v100
    %v102 = vlaneseq
    %v103 = vshrl.u32 %v102, 7
    %v104 = vsub.s32 6, %v103
    %v105 = vrot.slane %v76, %v104
    %v106 = vlaneseq
    %v107 = vshrl.u32 %v106, 7
    %v108 = vsub.s32 7, %v107
    %v109 = vrot.slane %v76, %v108
    %v110 = vlaneseq
    %v111 = vshrl.u32 %v110, 7
    %v112 = vsub.s32 0, %v111
    %v113 = vrot.slane %v77, %v112
    %v114 = vlaneseq
    %v115 = vshrl.u32 %v114, 7
    %v116 = vsub.s32 1, %v115
    %v117 = vrot.slane %v77, %v116
    %v118 = vlaneseq
    %v119 = vshrl.u32 %v118, 7
    %v120 = vsub.s32 2, %v119
    %v121 = vrot.slane %v77, %v120
    %v122 = vlaneseq
    %v123 = vshrl.u32 %v122, 7
    %v124 = vsub.s32 3, %v123
    %v125 = vrot.slane %v77, %v124
    %v126 = vld [vmem:[#allocation3] sm:$0xff]
    %v127 = vld [vmem:[#allocation4] sm:$0xff]
    %vm128 = vcmask 130048
    %129 = vst.msk [vmem:[#allocation2] sm:$0xff] %vm128, %v127
    %v130 = vld [vmem:[#allocation2] sm:$0xff]
    %v131 = vld [vmem:[%s3] sm:$0xff]
    %v132 = vld [vmem:[%s3 + $0x8] sm:$0xff]
    %v133 = vld [vmem:[%s3 + $0x10] sm:$0xff]
    %v134 = vld [vmem:[%s3 + $0x18] sm:$0xff]
    %v135 = vld [vmem:[%s3 + $0x20] sm:$0xff]
    %v136 = vld [vmem:[%s3 + $0x28] sm:$0xff]
    %vm137 = vcmask 392192
    %v139 = vsel %vm137, %v130, 0
    %141 = vmatprep.subr.mxu0 0.0
    %142 = vmatpush1.msra.mxu0 %v131
    %143 = vmatprep.subr.mxu0 0.0
    %144 = vmatpush1.msra.mxu0 %v132
    %145 = vmatprep.subr.mxu0 0.0
    %146 = vmatpush1.msra.mxu0 %v133
    %147 = vmatprep.subr.mxu0 0.0
    %148 = vmatpush1.msra.mxu0 %v134
    %149 = vmatprep.subr.mxu0 0.0
    %150 = vmatpush1.msra.mxu0 %v135
    %151 = vmatprep.subr.mxu0 0.0
    %152 = vmatpush1.msra.mxu0 %v136
    %153 = vmatprep.subr.mxu0 0.0
    %154 = vmatpush1.msra.mxu0 0.0
    %155 = vmatprep.subr.mxu0 0.0
    %156 = vmatpush1.msra.mxu0 0.0
    %157 = vmatprep.subr.mxu0 0.0
    %158 = vmatpush1.msra.mxu0 0.0
    %159 = vmatprep.subr.mxu0 0.0
    %160 = vmatpush1.msra.mxu0 0.0
    %161 = vmatprep.subr.mxu0 0.0
    %162 = vmatpush1.msra.mxu0 0.0
    %163 = vmatprep.subr.mxu0 0.0
    %164 = vmatpush1.msra.mxu0 0.0
    %165 = vmatprep.subr.mxu0 0.0
    %166 = vmatpush1.msra.mxu0 0.0
    %167 = vmatprep.subr.mxu0 0.0
    %168 = vmatpush1.msra.mxu0 0.0
    %169 = vmatprep.subr.mxu0 0.0
    %170 = vmatpush1.msra.mxu0 0.0
    %171 = vmatprep.subr.mxu0 0.0
    %172 = vmatpush1.msra.mxu0 0.0
    %173 = vmatprep.subr.mxu0 0.0
    %174 = vmatpush1.msra.mxu0 0.0
    %175 = vmatprep.subr.mxu0 0.0
    %176 = vmatpush1.msra.mxu0 0.0
    %177 = vmatprep.subr.mxu0 0.0
    %178 = vmatpush1.msra.mxu0 0.0
    %179 = vmatprep.subr.mxu0 0.0
    %180 = vmatpush1.msra.mxu0 0.0
    %181 = vmatprep.subr.mxu0 0.0
    %182 = vmatpush1.msra.mxu0 0.0
    %183 = vmatprep.subr.mxu0 0.0
    %184 = vmatpush1.msra.mxu0 0.0
    %185 = vmatprep.subr.mxu0 0.0
    %186 = vmatpush1.msra.mxu0 0.0
    %187 = vmatprep.subr.mxu0 0.0
    %188 = vmatpush1.msra.mxu0 0.0
    %189 = vmatprep.subr.mxu0 0.0
    %190 = vmatpush1.msra.mxu0 0.0
    %191 = vmatprep.subr.mxu0 0.0
    %192 = vmatpush1.msra.mxu0 0.0
    %193 = vmatprep.subr.mxu0 0.0
    %194 = vmatpush1.msra.mxu0 0.0
    %195 = vmatprep.subr.mxu0 0.0
    %196 = vmatpush1.msra.mxu0 0.0
    %197 = vmatprep.subr.mxu0 0.0
    %198 = vmatpush1.msra.mxu0 0.0
    %199 = vmatprep.subr.mxu0 0.0
    %200 = vmatpush1.msra.mxu0 0.0
    %201 = vmatprep.subr.mxu0 0.0
    %202 = vmatpush1.msra.mxu0 0.0
    %203 = vmatprep.subr.mxu0 0.0
    %204 = vmatpush1.msra.mxu0 0.0
    %205 = vmatprep.mubr.f32.mxu0 0.0
    %206 = vmatmul.mubr.f32.gmra.mrb[0].mxu0 %v139
    %v207 = vpop.f32.mrb[0].mxu0
    %v208 = vadd.f32 0.0, %v207
    %v209 = vpop.f32.mrb[0].mxu0
    %210 = vdwg.mxu0
    %v211 = vadd.f32 %v208, %v81
    %213 = vrot.lane.b32.xlu0 %v85, 32
    %v214 = vpop.permute.xlu0 %213
    %v216 = vadd.f32 %v208, %v214
    %vm217 = vcmask 261120
    %v218 = vsel %vm217, %v211, 0.0
    %v219 = vrot.slane %v218, 4
    %v220 = vadd.f32 %v218, %v219
    %v221 = vrot.slane %v220, 2
    %v222 = vadd.f32 %v220, %v221
    %v223 = vrot.slane %v222, 1
    %v224 = vadd.f32 %v222, %v223
    %v225 = vrcp.pop 8.0
    %v226 = vmul.f32 %v224, %v225
    %v227 = vmul.f32 %v211, %v211
    %v228 = vsel %vm217, %v227, 0.0
    %v229 = vrot.slane %v228, 4
    %v230 = vadd.f32 %v228, %v229
    %v231 = vrot.slane %v230, 2
    %v232 = vadd.f32 %v230, %v231
    %v233 = vrot.slane %v232, 1
    %v234 = vadd.f32 %v232, %v233
    %v235 = vmul.f32 %v234, %v225
    %v236 = vmul.f32 %v226, %v226
    %v237 = vsub.f32 %v235, %v236
    %v238 = vsub.f32 %v211, %v226
    %v239 = vadd.f32 %v237, 1e-05
    %v240 = vrsqrt.pop %v239
    %v241 = vmul.f32 %v238, %v240
    %v242 = vmul.f32 %v241, %v105
    %v243 = vadd.f32 %v242, %v109
    %vm244 = vcmp.gt.f32.partialorder %v243, 0.0
    %v245 = vmul.f32 %v243, 0.1
    %v246 = vsel %vm244, %v243, %v245
    %v247 = vld [vmem:[%s4] sm:$0xff]
    %v248 = vld [vmem:[%s4 + $0x8] sm:$0xff]
    %v249 = vld [vmem:[%s4 + $0x10] sm:$0xff]
    %v250 = vld [vmem:[%s4 + $0x18] sm:$0xff]
    %v252 = vsel %vm217, %v246, 0
    %254 = vmatprep.subr.mxu0 0.0
    %255 = vmatpush1.msra.mxu0 %v247
    %256 = vmatprep.subr.mxu0 0.0
    %257 = vmatpush1.msra.mxu0 %v248
    %258 = vmatprep.subr.mxu0 0.0
    %259 = vmatpush1.msra.mxu0 %v249
    %260 = vmatprep.subr.mxu0 0.0
    %261 = vmatpush1.msra.mxu0 %v250
    %262 = vmatprep.subr.mxu0 0.0
    %263 = vmatpush1.msra.mxu0 0.0
    %264 = vmatprep.subr.mxu0 0.0
    %265 = vmatpush1.msra.mxu0 0.0
    %266 = vmatprep.subr.mxu0 0.0
    %267 = vmatpush1.msra.mxu0 0.0
    %268 = vmatprep.subr.mxu0 0.0
    %269 = vmatpush1.msra.mxu0 0.0
    %270 = vmatprep.subr.mxu0 0.0
    %271 = vmatpush1.msra.mxu0 0.0
    %272 = vmatprep.subr.mxu0 0.0
    %273 = vmatpush1.msra.mxu0 0.0
    %274 = vmatprep.subr.mxu0 0.0
    %275 = vmatpush1.msra.mxu0 0.0
    %276 = vmatprep.subr.mxu0 0.0
    %277 = vmatpush1.msra.mxu0 0.0
    %278 = vmatprep.subr.mxu0 0.0
    %279 = vmatpush1.msra.mxu0 0.0
    %280 = vmatprep.subr.mxu0 0.0
    %281 = vmatpush1.msra.mxu0 0.0
    %282 = vmatprep.subr.mxu0 0.0
    %283 = vmatpush1.msra.mxu0 0.0
    %284 = vmatprep.subr.mxu0 0.0
    %285 = vmatpush1.msra.mxu0 0.0
    %286 = vmatprep.subr.mxu0 0.0
    %287 = vmatpush1.msra.mxu0 0.0
    %288 = vmatprep.subr.mxu0 0.0
    %289 = vmatpush1.msra.mxu0 0.0
    %290 = vmatprep.subr.mxu0 0.0
    %291 = vmatpush1.msra.mxu0 0.0
    %292 = vmatprep.subr.mxu0 0.0
    %293 = vmatpush1.msra.mxu0 0.0
    %294 = vmatprep.subr.mxu0 0.0
    %295 = vmatpush1.msra.mxu0 0.0
    %296 = vmatprep.subr.mxu0 0.0
    %297 = vmatpush1.msra.mxu0 0.0
    %298 = vmatprep.subr.mxu0 0.0
    %299 = vmatpush1.msra.mxu0 0.0
    %300 = vmatprep.subr.mxu0 0.0
    %301 = vmatpush1.msra.mxu0 0.0
    %302 = vmatprep.subr.mxu0 0.0
    %303 = vmatpush1.msra.mxu0 0.0
    %304 = vmatprep.subr.mxu0 0.0
    %305 = vmatpush1.msra.mxu0 0.0
    %306 = vmatprep.subr.mxu0 0.0
    %307 = vmatpush1.msra.mxu0 0.0
    %308 = vmatprep.subr.mxu0 0.0
    %309 = vmatpush1.msra.mxu0 0.0
    %310 = vmatprep.subr.mxu0 0.0
    %311 = vmatpush1.msra.mxu0 0.0
    %312 = vmatprep.subr.mxu0 0.0
    %313 = vmatpush1.msra.mxu0 0.0
    %314 = vmatprep.subr.mxu0 0.0
    %315 = vmatpush1.msra.mxu0 0.0
    %316 = vmatprep.subr.mxu0 0.0
    %317 = vmatpush1.msra.mxu0 0.0
    %318 = vmatprep.mubr.f32.mxu0 0.0
    %319 = vmatmul.mubr.f32.gmra.mrb[0].mxu0 %v252
    %v320 = vpop.f32.mrb[0].mxu0
    %v321 = vadd.f32 %v89, %v320
    %v322 = vpop.f32.mrb[0].mxu0
    %323 = vdwg.mxu0
    %v324 = vsel %vm217, %v321, 0.0
    %v325 = vrot.slane %v324, 4
    %v326 = vadd.f32 %v324, %v325
    %v327 = vrot.slane %v326, 2
    %v328 = vadd.f32 %v326, %v327
    %v329 = vrot.slane %v328, 1
    %v330 = vadd.f32 %v328, %v329
    %v331 = vmul.f32 %v330, %v225
    %v332 = vmul.f32 %v321, %v321
    %v333 = vsel %vm217, %v332, 0.0
    %v334 = vrot.slane %v333, 4
    %v335 = vadd.f32 %v333, %v334
    %v336 = vrot.slane %v335, 2
    %v337 = vadd.f32 %v335, %v336
    %v338 = vrot.slane %v337, 1
    %v339 = vadd.f32 %v337, %v338
    %v340 = vmul.f32 %v339, %v225
    %v341 = vmul.f32 %v331, %v331
    %v342 = vsub.f32 %v340, %v341
    %v343 = vsub.f32 %v321, %v331
    %v344 = vadd.f32 %v342, 1e-05
    %v345 = vrsqrt.pop %v344
    %v346 = vmul.f32 %v343, %v345
    %v347 = vmul.f32 %v346, %v113
    %v348 = vadd.f32 %v347, %v117
    %vm349 = vcmp.gt.f32.partialorder %v348, 0.0
    %v350 = vmul.f32 %v348, 0.1
    %v351 = vsel %vm349, %v348, %v350
    %v352 = vsel %vm217, %v351, %v216
    %v353 = vld [vmem:[%s5] sm:$0xff]
    %v354 = vld [vmem:[%s5 + $0x8] sm:$0xff]
    %v355 = vld [vmem:[%s5 + $0x10] sm:$0xff]
    %v356 = vld [vmem:[%s5 + $0x18] sm:$0xff]
    %v357 = vld [vmem:[%s5 + $0x20] sm:$0xff]
    %v358 = vld [vmem:[%s5 + $0x28] sm:$0xff]
    %v359 = vld [vmem:[%s5 + $0x30] sm:$0xff]
    %v360 = vld [vmem:[%s5 + $0x38] sm:$0xff]
    %vm361 = vcmask 523264
    %v363 = vsel %vm361, %v352, 0
    %365 = vmatprep.subr.mxu0 0.0
    %366 = vmatpush1.msra.mxu0 %v353
    %367 = vmatprep.subr.mxu0 0.0
    %368 = vmatpush1.msra.mxu0 %v354
    %369 = vmatprep.subr.mxu0 0.0
    %370 = vmatpush1.msra.mxu0 %v355
    %371 = vmatprep.subr.mxu0 0.0
    %372 = vmatpush1.msra.mxu0 %v356
    %373 = vmatprep.subr.mxu0 0.0
    %374 = vmatpush1.msra.mxu0 %v357
    %375 = vmatprep.subr.mxu0 0.0
    %376 = vmatpush1.msra.mxu0 %v358
    %377 = vmatprep.subr.mxu0 0.0
    %378 = vmatpush1.msra.mxu0 %v359
    %379 = vmatprep.subr.mxu0 0.0
    %380 = vmatpush1.msra.mxu0 %v360
    %381 = vmatprep.subr.mxu0 0.0
    %382 = vmatpush1.msra.mxu0 0.0
    %383 = vmatprep.subr.mxu0 0.0
    %384 = vmatpush1.msra.mxu0 0.0
    %385 = vmatprep.subr.mxu0 0.0
    %386 = vmatpush1.msra.mxu0 0.0
    %387 = vmatprep.subr.mxu0 0.0
    %388 = vmatpush1.msra.mxu0 0.0
    %389 = vmatprep.subr.mxu0 0.0
    %390 = vmatpush1.msra.mxu0 0.0
    %391 = vmatprep.subr.mxu0 0.0
    %392 = vmatpush1.msra.mxu0 0.0
    %393 = vmatprep.subr.mxu0 0.0
    %394 = vmatpush1.msra.mxu0 0.0
    %395 = vmatprep.subr.mxu0 0.0
    %396 = vmatpush1.msra.mxu0 0.0
    %397 = vmatprep.subr.mxu0 0.0
    %398 = vmatpush1.msra.mxu0 0.0
    %399 = vmatprep.subr.mxu0 0.0
    %400 = vmatpush1.msra.mxu0 0.0
    %401 = vmatprep.subr.mxu0 0.0
    %402 = vmatpush1.msra.mxu0 0.0
    %403 = vmatprep.subr.mxu0 0.0
    %404 = vmatpush1.msra.mxu0 0.0
    %405 = vmatprep.subr.mxu0 0.0
    %406 = vmatpush1.msra.mxu0 0.0
    %407 = vmatprep.subr.mxu0 0.0
    %408 = vmatpush1.msra.mxu0 0.0
    %409 = vmatprep.subr.mxu0 0.0
    %410 = vmatpush1.msra.mxu0 0.0
    %411 = vmatprep.subr.mxu0 0.0
    %412 = vmatpush1.msra.mxu0 0.0
    %413 = vmatprep.subr.mxu0 0.0
    %414 = vmatpush1.msra.mxu0 0.0
    %415 = vmatprep.subr.mxu0 0.0
    %416 = vmatpush1.msra.mxu0 0.0
    %417 = vmatprep.subr.mxu0 0.0
    %418 = vmatpush1.msra.mxu0 0.0
    %419 = vmatprep.subr.mxu0 0.0
    %420 = vmatpush1.msra.mxu0 0.0
    %421 = vmatprep.subr.mxu0 0.0
    %422 = vmatpush1.msra.mxu0 0.0
    %423 = vmatprep.subr.mxu0 0.0
    %424 = vmatpush1.msra.mxu0 0.0
    %425 = vmatprep.subr.mxu0 0.0
    %426 = vmatpush1.msra.mxu0 0.0
    %427 = vmatprep.subr.mxu0 0.0
    %428 = vmatpush1.msra.mxu0 0.0
    %429 = vmatprep.mubr.f32.mxu0 0.0
    %430 = vmatmul.mubr.f32.gmra.mrb[0].mxu0 %v363
    %v431 = vpop.f32.mrb[0].mxu0
    %v432 = vadd.f32 0.0, %v431
    %v433 = vpop.f32.mrb[0].mxu0
    %434 = vdwg.mxu0
    %v435 = vadd.f32 %v126, %v432
    %v436 = vadd.f32 %v435, %v93
    %v437 = vsel %vm217, %v436, 0.0
    %v438 = vrot.slane %v437, 4
    %v439 = vadd.f32 %v437, %v438
    %v440 = vrot.slane %v439, 2
    %v441 = vadd.f32 %v439, %v440
    %v442 = vrot.slane %v441, 1
    %v443 = vadd.f32 %v441, %v442
    %v444 = vmul.f32 %v443, %v225
    %v445 = vmul.f32 %v436, %v436
    %v446 = vsel %vm217, %v445, 0.0
    %v447 = vrot.slane %v446, 4
    %v448 = vadd.f32 %v446, %v447
    %v449 = vrot.slane %v448, 2
    %v450 = vadd.f32 %v448, %v449
    %v451 = vrot.slane %v450, 1
    %v452 = vadd.f32 %v450, %v451
    %v453 = vmul.f32 %v452, %v225
    %v454 = vmul.f32 %v444, %v444
    %v455 = vsub.f32 %v453, %v454
    %v456 = vsub.f32 %v436, %v444
    %v457 = vadd.f32 %v455, 1e-05
    %v458 = vrsqrt.pop %v457
    %v459 = vmul.f32 %v456, %v458
    %v460 = vmul.f32 %v459, %v121
    %v461 = vadd.f32 %v460, %v125
    %vm462 = vcmp.gt.f32.partialorder %v461, 0.0
    %v463 = vmul.f32 %v461, 0.1
    %v464 = vsel %vm462, %v461, %v463
    %v465 = vadd.f32 %v246, %v351
    %v466 = vadd.f32 %v465, %v464
    %v467 = vmul.f32 %v466, %v97
    %v468 = vsel %vm217, %v467, 0.0
    %469 = vadd.xlane.f32.xlu0 %v468
    %v470 = vpop.xlane.xlu0 %469
    %v471 = vadd.f32 %v470, %v101
    %473 = vset.pattern.permute.xlu0 0
    %474 = vperm.xlu0 %473, %v471
    %v475 = vpop.permute.xlu0 %474
    %478 = vrot.lane.b32.xlu0 %v351, 32
    %v479 = vpop.permute.xlu0 %478
    %482 = vrot.lane.b32.xlu0 %v464, 64
    %v483 = vpop.permute.xlu0 %482
    %v485 = vsel %vm217, %v246, %v479
    %v486 = vsel %vm361, %v485, %v483
    %vm487 = vcmask 785408
    %v488 = vsel %vm487, %v486, %v475
    %489 = vst [vmem:[#allocation10] sm:$0xff] %v488
    %490 = vrot.lane.b32.xlu0 %v246, 16
    %v491 = vpop.permute.xlu0 %490
    %vm493 = vcmask 392320
    %494 = vst.msk [vmem:[#allocation2] sm:$0xff] %vm493, %v491
    %495 = vst.msk [vmem:[#allocation3] sm:$0xff] %vm217, %v464
    // Predicated region
    $region46: #{tpu_custom_call.1} parent=1 // pred_check
      _
    $region47: #{tpu_custom_call.1} parent=1 // pred_check_branch
      %497 = sbr.rel (0) target = $region49
    $region48: #{tpu_custom_call.1} parent=1 // pred_region
      %s499 = ssub.s32 128, 128
      %500 = vsyncadd [#allocation6], %s499
      %s502 = sshll.u32 [#allocation10], 4
      %s503 = int_to_ptr.vmem [resolvable:$true] %s502
      %505 = dma.vmem_to_hbm [thread:$0]  %s503, 128, %s7, [#allocation6]
    $region49: #{tpu_custom_call.1} parent=1 // pred_fallthru
      _
    // Predicated region
    $region50: #{tpu_custom_call.1} parent=1 // pred_check
      _
    $region51: #{tpu_custom_call.1} parent=1 // pred_check_branch
      %507 = sbr.rel (0) target = $region53
    $region52: #{tpu_custom_call.1} parent=1 // pred_region
      %508 = dma.done [#allocation6], 128
    $region53: #{tpu_custom_call.1} parent=1 // pred_fallthru
      _
    %509 = vsyncpa [#allocation5], 1
    %510 = vsyncpa [#allocation8], 1
    %511 = vsyncpa [#allocation6], 1

</llo_original>
